<compile_context>
chip_gen: v5e
topology: v5e:2x2
jax: 0.10.0
libtpu: 0.0.40
codegen_flags: <defaults>
</compile_context>

<pallas_src>
import jax
import jax.numpy as jnp
from jax import lax
from jax.experimental import pallas as pl
from jax.experimental.pallas import tpu as pltpu


_LANE = 128
_SUBLANE = 8
_ROW_TILE_TARGET = 256       # row tile assumed when sizing the reduction chunk
_GROUP = 4                   # 128-lane slices summed before updating the carry


def _round_up(x, m):
    return ((x + m - 1) // m) * m


def _cdiv(a, b):
    return -(-a // b)


def _hw_params():
    """Generation-aware (target_block_bytes, vmem_limit_bytes)."""
    vmem_cap = 128 * 1024 * 1024
    try:
        info = pltpu.get_tpu_info()
        vmem_cap = int(getattr(info, "vmem_capacity_bytes", vmem_cap))
    except Exception:
        pass
    if vmem_cap <= 64 * 1024 * 1024:
        # v7x-class: 64 MiB physical VMEM, ~3.2 TB/s HBM -> big blocks, but
        # leave headroom under the smaller VMEM.
        return 10 * 1024 * 1024, 48 * 1024 * 1024
    # v5e / v6e: 128 MiB VMEM.
    return 12 * 1024 * 1024, 64 * 1024 * 1024


def _choose_tiles(rows, hw, itemsize, target_block_bytes, vmem_limit_bytes):
    """Pick (tm, tk, n_k) for the (rows, hw) row-mean. No wrapper padding."""
    rows8 = _round_up(max(rows, 1), _SUBLANE)
    hw_lanes = _round_up(hw, _LANE)

    # ---- reduction (H*W) chunking ------------------------------------------
    if _ROW_TILE_TARGET * hw_lanes * itemsize <= target_block_bytes:
        # Whole spatial extent fits next to a decent row tile: single k step.
        # tk == full last dim, so the (8,128) rule is satisfied even if hw is
        # not a multiple of 128.
        tk = hw
        tk_lanes = hw_lanes
    else:
        # Lane-aligned chunks; the last chunk's remainder is handled in-kernel
        # (static valid-column count), never via wrapper padding.
        tk = max(_LANE,
                 (target_block_bytes // (_ROW_TILE_TARGET * itemsize))
                 // _LANE * _LANE)
        tk_lanes = tk
    n_k = _cdiv(hw, tk)

    # ---- row tiling: size purely from byte budgets -------------------------
    per_row_in = tk_lanes * itemsize
    # double-buffered input + (tm,128) f32 acc + carried partial
    # + double-buffered lane-padded output tile
    per_row_vmem = 2 * per_row_in + 2 * _LANE * 4 + 2 * _LANE * itemsize
    vmem_budget = max(vmem_limit_bytes - 4 * 1024 * 1024, 2 * 1024 * 1024)

    tm = min(target_block_bytes // per_row_in, vmem_budget // per_row_vmem)
    tm = max(_SUBLANE, (tm // _SUBLANE) * _SUBLANE)
    tm = min(tm, rows8)
    if rows < _SUBLANE:
        tm = rows                      # block dim == full dim -> allowed

    # Give the "parallel" row axis >= 2 steps when possible (v7x megacore).
    if rows >= 2 * _SUBLANE and _cdiv(rows, tm) < 2:
        tm = _round_up(_cdiv(rows8, 2), _SUBLANE)

    return tm, tk, n_k


def _sum_cols(x_ref, tm, ncols):
    """(tm, 128) f32 partial holding the sum over x_ref[:, :ncols]."""
    n_full, rem = divmod(ncols, _LANE)
    n_groups, tail_full = divmod(n_full, _GROUP)

    part = jnp.zeros((tm, _LANE), jnp.float32)

    if n_groups > 0:
        def body(g, carry):
            base = pl.multiple_of(g * (_GROUP * _LANE), _LANE)
            s = x_ref[:, pl.ds(base, _LANE)].astype(jnp.float32)
            for j in range(1, _GROUP):
                off = pl.multiple_of(base + j * _LANE, _LANE)
                s = s + x_ref[:, pl.ds(off, _LANE)].astype(jnp.float32)
            return carry + s

        part = lax.fori_loop(0, n_groups, body, part, unroll=True)

    base0 = n_groups * _GROUP * _LANE
    for j in range(tail_full):
        off = pl.multiple_of(base0 + j * _LANE, _LANE)
        part = part + x_ref[:, pl.ds(off, _LANE)].astype(jnp.float32)

    if rem > 0:
        tail = x_ref[:, pl.ds(n_full * _LANE, rem)].astype(jnp.float32)
        pad = jnp.zeros((tm, _LANE - rem), jnp.float32)
        part = part + jnp.concatenate([tail, pad], axis=-1)

    return part


def _make_gap_kernel(tm, tk, n_k, hw):
    inv_hw = 1.0 / hw
    overhang = n_k * tk - hw                     # >0 only in the split path
    last_cols = tk - overhang if overhang > 0 else tk

    def kernel(x_ref, o_ref, acc_ref):
        k = pl.program_id(1)

        @pl.when(k == 0)
        def _():
            acc_ref[...] = jnp.zeros_like(acc_ref)

        if overhang == 0:
            acc_ref[...] += _sum_cols(x_ref, tm, tk)
        else:
            @pl.when(k < n_k - 1)
            def _():
                acc_ref[...] += _sum_cols(x_ref, tm, tk)

            @pl.when(k == n_k - 1)
            def _():
                # Last chunk: only the statically-known valid columns are read,
                # so out-of-bounds garbage never enters the sum.
                acc_ref[...] += _sum_cols(x_ref, tm, last_cols)

        @pl.when(k == n_k - 1)
        def _():
            row_sum = jnp.sum(acc_ref[...], axis=-1, keepdims=True)
            o_ref[...] = (row_sum * inv_hw).astype(o_ref.dtype)

    return kernel


@jax.jit
def global_average_pooling(feat):
    """feat: (B, C, H, W) -> (B, C), mean over the spatial dims."""
    B, C, H, W = feat.shape
    rows, hw = B * C, H * W
    itemsize = jnp.dtype(feat.dtype).itemsize

    target_block, vmem_limit = _hw_params()
    tm, tk, n_k = _choose_tiles(rows, hw, itemsize, target_block, vmem_limit)

    x = feat.reshape(rows, hw)                    # glue reshape, no compute

    out = pl.pallas_call(
        _make_gap_kernel(tm, tk, n_k, hw),
        out_shape=jax.ShapeDtypeStruct((rows, 1), feat.dtype),
        grid_spec=pltpu.PrefetchScalarGridSpec(
            num_scalar_prefetch=0,
            grid=(_cdiv(rows, tm), n_k),          # rows parallel, reduction last
            in_specs=[pl.BlockSpec((tm, tk), lambda r, k: (r, k))],
            out_specs=pl.BlockSpec((tm, 1), lambda r, k: (r, 0)),
            scratch_shapes=[pltpu.VMEM((tm, _LANE), jnp.float32)],
        ),
        compiler_params=pltpu.CompilerParams(
            dimension_semantics=("parallel", "arbitrary"),
            vmem_limit_bytes=vmem_limit,
        ),
        cost_estimate=pl.CostEstimate(
            flops=rows * hw,
            transcendentals=0,
            bytes_accessed=rows * hw * itemsize + rows * itemsize,
        ),
    )(x)

    return out.reshape(B, C)


if __name__ == "__main__":
    key = jax.random.PRNGKey(0)

    # Shape implied by the module's forward: (B, C, H, W).
    B, C, H, W = 2, 4, 16, 16
    feat = jax.random.normal(key, (B, C, H, W), dtype=jnp.float32)

    out = global_average_pooling(feat)
    jax.block_until_ready(out)
    ref = jnp.mean(feat, axis=(2, 3))
    assert out.shape == (B, C), out.shape
    assert jnp.allclose(out, ref, atol=1e-5, rtol=1e-5), "mismatch vs reference"

    # Unaligned shape: exercises the no-pad row remainder + lane-tail path.
    feat2 = jax.random.normal(jax.random.PRNGKey(0), (2, 5, 7, 7),
                              dtype=jnp.float32)
    out2 = global_average_pooling(feat2)
    jax.block_until_ready(out2)
    ref2 = jnp.mean(feat2, axis=(2, 3))
    assert out2.shape == (2, 5), out2.shape
    assert jnp.allclose(out2, ref2, atol=1e-5, rtol=1e-5), "mismatch (odd shape)"

    print("KERNEL_OK")
</pallas_src>

<mosaic_0001>
module attributes {stable_mosaic.version = 11 : i64} {
  func.func @kernel(%arg0: i32, %arg1: i32, %arg2: memref<8x256xf32, #tpu.memory_space<vmem>>, %arg3: memref<8x1xf32, #tpu.memory_space<vmem>>, %arg4: memref<8x128xf32, #tpu.memory_space<vmem>>) attributes {dimension_semantics = [#tpu.dimension_semantics<parallel>, #tpu.dimension_semantics<arbitrary>], iteration_bounds = array<i64: 1, 1>, scalar_prefetch = 0 : i64, scratch_operands = 1 : i64, tpu.core_type = #tpu.core_type<tc>, window_params = [{transform_indices = @transform_0, window_bounds = array<i64: 8, 256>}, {transform_indices = @transform_1, window_bounds = array<i64: 8, 1>}]} {
    %c0_i32 = arith.constant 0 : i32
    %0 = arith.cmpi eq, %arg1, %c0_i32 : i32
    %1 = arith.extui %0 : i1 to i32
    %c0_i32_0 = arith.constant 0 : i32
    %2 = arith.cmpi ne, %1, %c0_i32_0 : i32
    scf.if %2 {
      %cst_9 = arith.constant 0.000000e+00 : f32
      %18 = vector.broadcast %cst_9 : f32 to vector<8x128xf32>
      %c0_10 = arith.constant 0 : index
      %c0_11 = arith.constant 0 : index
      %19 = vector.load %arg4[%c0_10, %c0_11] : memref<8x128xf32, #tpu.memory_space<vmem>>, vector<8x128xf32>
      tpu.vector_store %arg4[%c0_10, %c0_11], %18 {strides = array<i32>} : memref<8x128xf32, #tpu.memory_space<vmem>>, vector<8x128xf32>,
    } else {
    }
    %c0 = arith.constant 0 : index
    %c0_1 = arith.constant 0 : index
    %3 = vector.load %arg4[%c0, %c0_1] : memref<8x128xf32, #tpu.memory_space<vmem>>, vector<8x128xf32>
    %cst = arith.constant 0.000000e+00 : f32
    %4 = vector.broadcast %cst : f32 to vector<8x128xf32>
    %c0_i32_2 = arith.constant 0 : i32
    %5 = tpu.assume_multiple %c0_i32_2, 128 : i32
    %c0_3 = arith.constant 0 : index
    %6 = arith.index_cast %5 : i32 to index
    %7 = vector.load %arg2[%c0_3, %6] : memref<8x256xf32, #tpu.memory_space<vmem>>, vector<8x128xf32>
    %8 = arith.addf %4, %7 : vector<8x128xf32>
    %c128_i32 = arith.constant 128 : i32
    %9 = tpu.assume_multiple %c128_i32, 128 : i32
    %c0_4 = arith.constant 0 : index
    %10 = arith.index_cast %9 : i32 to index
    %11 = vector.load %arg2[%c0_4, %10] : memref<8x256xf32, #tpu.memory_space<vmem>>, vector<8x128xf32>
    %12 = arith.addf %8, %11 : vector<8x128xf32>
    %13 = arith.addf %3, %12 : vector<8x128xf32>
    %c0_5 = arith.constant 0 : index
    %c0_6 = arith.constant 0 : index
    %14 = vector.load %arg4[%c0_5, %c0_6] : memref<8x128xf32, #tpu.memory_space<vmem>>, vector<8x128xf32>
    tpu.vector_store %arg4[%c0_5, %c0_6], %13 {strides = array<i32>} : memref<8x128xf32, #tpu.memory_space<vmem>>, vector<8x128xf32>,
    %c0_i32_7 = arith.constant 0 : i32
    %15 = arith.cmpi eq, %arg1, %c0_i32_7 : i32
    %16 = arith.extui %15 : i1 to i32
    %c0_i32_8 = arith.constant 0 : i32
    %17 = arith.cmpi ne, %16, %c0_i32_8 : i32
    scf.if %17 {
      %c0_9 = arith.constant 0 : index
      %c0_10 = arith.constant 0 : index
      %18 = vector.load %arg4[%c0_9, %c0_10] : memref<8x128xf32, #tpu.memory_space<vmem>>, vector<8x128xf32>
      %cst_11 = arith.constant dense<0.000000e+00> : vector<8xf32>
      %19 = vector.multi_reduction <add>, %18, %cst_11 [1] : vector<8x128xf32> to vector<8xf32>
      %20 = vector.shape_cast %19 : vector<8xf32> to vector<8x1xf32>
      %cst_12 = arith.constant 3.906250e-03 : f32
      %21 = vector.broadcast %cst_12 : f32 to vector<8x1xf32>
      %22 = arith.mulf %20, %21 : vector<8x1xf32>
      %c0_13 = arith.constant 0 : index
      %c0_14 = arith.constant 0 : index
      %23 = vector.load %arg3[%c0_13, %c0_14] : memref<8x1xf32, #tpu.memory_space<vmem>>, vector<8x1xf32>
      tpu.vector_store %arg3[%c0_13, %c0_14], %22 {strides = array<i32>} : memref<8x1xf32, #tpu.memory_space<vmem>>, vector<8x1xf32>,
    } else {
    }
    return
  }
  func.func @transform_0(%arg0: i32, %arg1: i32) -> (i32, i32) {
    %c0_i32 = arith.constant 0 : i32
    return %arg0, %arg1 : i32, i32
  }
  func.func @transform_1(%arg0: i32, %arg1: i32) -> (i32, i32) {
    %c0_i32 = arith.constant 0 : i32
    %c0_i32_0 = arith.constant 0 : i32
    return %arg0, %c0_i32 : i32, i32
  }
}

</mosaic_0001>

<llo_original>
// kernel: global_average_pooling.1
$region0: #{global_average_pooling.1}
  #allocation0 [shape = 'u32[]', space=smem, size = 0x4, offset = 0x4, fixed_abs, tag = 'smem constant byte address 0x4 - core index']
  #allocation1 [shape = 'u32[72,128]{1,0:T(1,128)}', space=vmem, size = 0x9000, scoped, tag = 'internal scratch']
  #allocation2 [shape = 'f32[8,128]{1,0:T(8,128)}', space=vmem, size = 0x1000, scoped, tag = 'scratch operand']
  %s0 = inlined_call_operand.vmem [shape: f32[8,256], index: 0, kind: input, shape index: {}]
  %s1 = inlined_call_operand.vmem [shape: f32[8,1], index: 1, kind: output, shape index: {}]
  %s2 = sld [smem:[#allocation0]]
  $region22: #{global_average_pooling.1} parent=0
    _
  %s4 = ssub.s32 1, %s2
  %s5 = scalar_select 0, %s4, %s2
  // Predicated region
  $region2: #{global_average_pooling.1} parent=0 // pred_check
    _
  $region3: #{global_average_pooling.1} parent=0 // pred_check_branch
    %7 = sbr.rel (0) target = $region5
  $region4: #{global_average_pooling.1} parent=0 // pred_region
    _
  $region5: #{global_average_pooling.1} parent=0 // pred_fallthru
    _
  %p8 = scmp.eq.s32.totalorder 0, 0
  // Predicated region
  $region6: #{global_average_pooling.1} parent=0 // pred_check
    %p9 = pneg %p8
  $region7: #{global_average_pooling.1} parent=0 // pred_check_branch
    %11 = sbr.rel (%p9) target = $region9
  $region8: #{global_average_pooling.1} parent=0 // pred_region
    %12 = vst [vmem:[#allocation2] sm:$0xff] 0.0
  $region9: #{global_average_pooling.1} parent=0 // pred_fallthru
    _
  %v13 = vld [vmem:[#allocation2] sm:$0xff]
  %v14 = vld [vmem:[%s0] sm:$0xff]
  %v15 = vadd.f32 %v14, 0.0
  %s16 = scalar_lea.vmem %s0, 8
  %v17 = vld [vmem:[%s16] sm:$0xff]
  %v18 = vadd.f32 %v15, %v17
  %v19 = vadd.f32 %v13, %v18
  %20 = vst [vmem:[#allocation2] sm:$0xff] %v19
  // Predicated region
  $region10: #{global_average_pooling.1} parent=0 // pred_check
    %p21 = pneg %p8
  $region11: #{global_average_pooling.1} parent=0 // pred_check_branch
    %23 = sbr.rel (%p21) target = $region13
  $region12: #{global_average_pooling.1} parent=0 // pred_region
    %v24 = vld [vmem:[#allocation2] sm:$0xff]
    %25 = vadd.xlane.f32.xlu0 %v24
    %v26 = vpop.xlane.xlu0 %25
    %v27 = vmul.f32 %v26, 0.00390625
    %vm28 = vcmask 7168
    %29 = vst.msk [vmem:[%s1] sm:$0xff] %vm28, %v27
  $region13: #{global_average_pooling.1} parent=0 // pred_fallthru
    _
  // Predicated region
  $region14: #{global_average_pooling.1} parent=0 // pred_check
    _
  $region15: #{global_average_pooling.1} parent=0 // pred_check_branch
    %31 = sbr.rel (0) target = $region17
  $region16: #{global_average_pooling.1} parent=0 // pred_region
    _
  $region17: #{global_average_pooling.1} parent=0 // pred_fallthru
    _
  // Predicated region
  $region18: #{global_average_pooling.1} parent=0 // pred_check
    _
  $region19: #{global_average_pooling.1} parent=0 // pred_check_branch
    %33 = sbr.rel (0) target = $region21
  $region20: #{global_average_pooling.1} parent=0 // pred_region
    _
  $region21: #{global_average_pooling.1} parent=0 // pred_fallthru
    _

</llo_original>
